<compile_context>
chip_gen: v7x
topology: tpu7x:2x2x1
jax: 0.10.0
libtpu: 0.0.40
codegen_flags: <defaults>
</compile_context>

<pallas_src>
import jax
import jax.numpy as jnp
from jax.experimental import pallas as pl
from jax.experimental.pallas import tpu as pltpu

# ---- model hyper-parameters (feature_dim must be divisible by the 3 heads) ----
LENGTH = 6                        # number of chemical elements
EMB = 6                           # embedding size
FEAT = LENGTH * EMB               # 36 = attention feature_dim
NUM_HEADS = 3                     # fixed by embedding_attention.__init__
DIM_PER_HEAD = FEAT // NUM_HEADS  # 12
LN_EPS = 1e-5                     # PyTorch nn.LayerNorm default
TILE_B = 2048                     # batch tile (batch-in-lanes; ~0.6 MiB live per step)

assert FEAT % NUM_HEADS == 0


def _round_up(n, m):
    return ((n + m - 1) // m) * m


def _choose_tile(batch, tile_b):
    """Lane-aligned batch tile; prefer >= 2 grid steps so v7x's 2 TensorCores both work."""
    tb = max(128, min(_round_up(tile_b, 128), _round_up(batch, 128)))
    if _round_up(batch, tb) // tb < 2 and tb >= 256:
        tb = _round_up(tb // 2, 128)
    bp = _round_up(batch, tb)
    return tb, bp


def _layer_norm(z, w, b):
    mu = jnp.mean(z, axis=-1, keepdims=True)
    var = jnp.mean(jnp.square(z - mu), axis=-1, keepdims=True)
    return (z - mu) * jax.lax.rsqrt(var + LN_EPS) * w + b


# ----------------------------- fused Pallas kernel -----------------------------
def _fused_kernel(xT_ref, wpreT_ref, bpre_ref, g_ref, cvec_ref, out_ref):
    f32 = jnp.float32
    # Batch-in-lanes: xT is (LENGTH, TILE_B); z is (FEAT, TILE_B), fully lane-dense.
    z = (jnp.dot(wpreT_ref[...], xT_ref[...], preferred_element_type=f32)
         + bpre_ref[...])                                        # (F, TB)

    inv_f = f32(1.0 / FEAT)
    mu = jnp.sum(z, axis=0, keepdims=True) * inv_f               # (1, TB)
    ez2 = jnp.sum(z * z, axis=0, keepdims=True) * inv_f          # (1, TB)
    var = ez2 - mu * mu                                          # E[z^2] - mu^2

    # LayerNorm affine + Linear(F, 1) folded into one weighted reduction:
    #   res = rsqrt(var + eps) * (sum_f(z * g) - mu * sum(g)) + c
    g = g_ref[...]                                               # (F, 1)
    zg = jnp.sum(z * g, axis=0, keepdims=True)                   # (1, TB)
    sum_g = jnp.sum(g, axis=0, keepdims=True)                    # (1, 1)
    c = jnp.sum(cvec_ref[...], axis=0, keepdims=True)            # (1, 1) = sum(ln_b*wf) + bf

    out_ref[...] = jax.lax.rsqrt(var + LN_EPS) * (zg - mu * sum_g) + c   # (1, TB), lane-dense


def embedding_attention_forward(x, p, tile_b=TILE_B):
    """x: (B, LENGTH) float32 -> (B, 1, 1) float32."""
    B = x.shape[0]
    tb, bp = _choose_tile(B, tile_b)
    num_tiles = bp // tb

    # Batch-in-lanes layout, padded to the lane tile.  One extra (tiny) pass over x;
    # a producer that already emits (LENGTH, B) would avoid it.
    xT = jnp.pad(jnp.transpose(x), ((0, 0), (0, bp - B)))

    const = lambda i: (0, 0)      # weights: same block every step (VMEM-resident)
    in_specs = [
        pl.BlockSpec((LENGTH, tb), lambda i: (0, i)),   # x tile (lane-dense rows)
        pl.BlockSpec((FEAT, LENGTH), const),            # w_pre^T
        pl.BlockSpec((FEAT, 1), const),                 # b_pre column
        pl.BlockSpec((FEAT, 1), const),                 # g = ln_w * wf
        pl.BlockSpec((FEAT, 1), const),                 # cvec = ln_b*wf + bf/F
    ]

    flops = int(bp * (2 * LENGTH * FEAT + 8 * FEAT))
    bytes_acc = int(bp * (LENGTH + 1) * 4 + FEAT * (LENGTH + 3) * 4)

    out = pl.pallas_call(
        _fused_kernel,
        out_shape=jax.ShapeDtypeStruct((1, bp), jnp.float32),
        grid=(num_tiles,),
        in_specs=in_specs,
        out_specs=pl.BlockSpec((1, tb), lambda i: (0, i)),       # lane-dense output row
        compiler_params=pltpu.CompilerParams(
            dimension_semantics=("parallel",),
            vmem_limit_bytes=32 * 1024 * 1024,
        ),
        cost_estimate=pl.CostEstimate(
            flops=flops, transcendentals=int(bp), bytes_accessed=bytes_acc),
    )(xT, p["w_pre_t"], p["b_pre_col"], p["g_col"], p["cvec_col"])

    return out.reshape(bp)[:B].reshape(B, 1, 1)


# --------------------------- deterministic parameters ---------------------------
def init_params(key):
    ks = jax.random.split(key, 6)

    def lin(k, fan_in, fan_out):
        kw, kb = jax.random.split(k)
        bound = 1.0 / (fan_in ** 0.5)
        w = jax.random.uniform(kw, (fan_in, fan_out), jnp.float32, -bound, bound)
        b = jax.random.uniform(kb, (1, fan_out), jnp.float32, -bound, bound)
        return w, b

    emb_w = jax.random.normal(ks[0], (LENGTH, EMB), jnp.float32)
    wq, bq = lin(ks[1], FEAT, FEAT)
    wk, bk = lin(ks[2], FEAT, FEAT)
    wv, bv = lin(ks[3], FEAT, FEAT)
    wa, ba = lin(ks[4], FEAT, FEAT)
    wf, bf = lin(ks[5], FEAT, 1)

    # trans[i, i*E + j] = 1 (same block-diagonal expansion the torch code builds)
    rows = jnp.repeat(jnp.arange(LENGTH), EMB)
    cols = jnp.arange(FEAT)
    trans = jnp.zeros((LENGTH, FEAT), jnp.float32).at[rows, cols].set(1.0)

    ln_w = jnp.ones((1, FEAT), jnp.float32)
    ln_b = jnp.zeros((1, FEAT), jnp.float32)

    # ---- host-side constant folds consumed by the Pallas kernel ----
    emb_flat = emb_w.reshape(1, FEAT)
    w_emb = trans * emb_flat                   # f = x @ w_emb  (embedding fold)
    wva = wv @ wa                              # v-proj folded into out-proj (seq_len == 1)
    bva = bv @ wa + ba
    w_pre = w_emb + w_emb @ wva                # residual + attention in one (L, F) matmul
    b_pre = bva                                # (1, F)

    g = ln_w.reshape(FEAT) * wf.reshape(FEAT)                       # LN affine * final weight
    cvec = ln_b.reshape(FEAT) * wf.reshape(FEAT) + bf[0, 0] / FEAT  # sums to ln_b.wf + bf

    return dict(
        # raw (torch-faithful) parameters, used by the reference path
        emb=emb_w, trans=trans,
        wq=wq, bq=bq, wk=wk, bk=bk, wv=wv, bv=bv, wa=wa, ba=ba,
        ln_w=ln_w, ln_b=ln_b, wf=wf, bf=bf,
        # folded constants used by the kernel (batch-in-lanes layout)
        w_pre_t=w_pre.T,                       # (F, L)
        b_pre_col=b_pre.reshape(FEAT, 1),      # (F, 1)
        g_col=g.reshape(FEAT, 1),              # (F, 1)
        cvec_col=cvec.reshape(FEAT, 1),        # (F, 1)
    )


# ------------------------ pure-JAX reference (torch-faithful) ------------------------
def reference_forward(x, p):
    B = x.shape[0]
    # chemical_embedding
    embed = jnp.tile(p["emb"].reshape(-1), (B,))                  # (B*F,)
    expanded = (x @ p["trans"]).reshape(-1)                       # (B*F,)
    f = (expanded * embed).reshape(B, 1, FEAT)
    # multi_heads_self_attention (full path, including q/k/softmax/scale)
    residual = f
    key = (f @ p["wk"] + p["bk"]).reshape(B * NUM_HEADS, -1, DIM_PER_HEAD)
    value = (f @ p["wv"] + p["bv"]).reshape(B * NUM_HEADS, -1, DIM_PER_HEAD)
    query = (f @ p["wq"] + p["bq"]).reshape(B * NUM_HEADS, -1, DIM_PER_HEAD)
    scale = (DIM_PER_HEAD // NUM_HEADS) ** (-0.5) if (DIM_PER_HEAD // NUM_HEADS) != 0 else 1
    attention = jnp.einsum('ijk,ilk->ijl', query, key)
    if scale:
        attention = attention * scale
    attention = jax.nn.softmax(attention, axis=2)
    context = jnp.einsum('ijl,ilk->ijk', attention, value).reshape(B, -1, FEAT)
    out = context @ p["wa"] + p["ba"]
    out = _layer_norm(residual + out, p["ln_w"], p["ln_b"])
    # linear_final
    return out @ p["wf"] + p["bf"]                                # (B, 1, 1)


if __name__ == "__main__":
    root = jax.random.PRNGKey(0)
    kx, kp = jax.random.split(root)
    B = 8
    x = jax.random.uniform(kx, (B, LENGTH), jnp.float32)
    params = init_params(kp)

    out = jax.jit(embedding_attention_forward)(x, params)
    out = jax.block_until_ready(out)

    ref = reference_forward(x, params)
    assert out.shape == (B, 1, 1), out.shape
    assert jnp.allclose(out, ref, rtol=1e-3, atol=1e-3), (out.ravel(), ref.ravel())
    print("KERNEL_OK")
</pallas_src>

<mosaic_0001>
module attributes {stable_mosaic.version = 11 : i64} {
  func.func @_fused_kernel(%arg0: i32, %arg1: memref<6x128xf32, #tpu.memory_space<vmem>>, %arg2: memref<36x6xf32, #tpu.memory_space<vmem>>, %arg3: memref<36x1xf32, #tpu.memory_space<vmem>>, %arg4: memref<36x1xf32, #tpu.memory_space<vmem>>, %arg5: memref<36x1xf32, #tpu.memory_space<vmem>>, %arg6: memref<1x128xf32, #tpu.memory_space<vmem>>) attributes {dimension_semantics = [#tpu.dimension_semantics<parallel>], iteration_bounds = array<i64: 1>, scalar_prefetch = 0 : i64, scratch_operands = 0 : i64, tpu.core_type = #tpu.core_type<tc>, window_params = [{transform_indices = @transform_0, window_bounds = array<i64: 6, 128>}, {pipeline_mode = #tpu.pipeline_mode<synchronous>, transform_indices = @transform_1, window_bounds = array<i64: 36, 6>}, {pipeline_mode = #tpu.pipeline_mode<synchronous>, transform_indices = @transform_2, window_bounds = array<i64: 36, 1>}, {pipeline_mode = #tpu.pipeline_mode<synchronous>, transform_indices = @transform_3, window_bounds = array<i64: 36, 1>}, {pipeline_mode = #tpu.pipeline_mode<synchronous>, transform_indices = @transform_4, window_bounds = array<i64: 36, 1>}, {transform_indices = @transform_5, window_bounds = array<i64: 1, 128>}]} {
    %c0 = arith.constant 0 : index
    %c0_0 = arith.constant 0 : index
    %0 = vector.load %arg2[%c0, %c0_0] : memref<36x6xf32, #tpu.memory_space<vmem>>, vector<36x6xf32>
    %c0_1 = arith.constant 0 : index
    %c0_2 = arith.constant 0 : index
    %1 = vector.load %arg1[%c0_1, %c0_2] : memref<6x128xf32, #tpu.memory_space<vmem>>, vector<6x128xf32>
    %cst = arith.constant dense<0.000000e+00> : vector<36x128xf32>
    %2 = tpu.matmul %0, %1, %cst {dimension_numbers = #tpu.dot_dimension_numbers<[1], [0], [0], [1], [0, 0, 1, 1], [], []>} : vector<36x6xf32>, vector<6x128xf32>, vector<36x128xf32> -> vector<36x128xf32>
    %c0_3 = arith.constant 0 : index
    %c0_4 = arith.constant 0 : index
    %3 = vector.load %arg3[%c0_3, %c0_4] : memref<36x1xf32, #tpu.memory_space<vmem>>, vector<36x1xf32>
    %4 = vector.broadcast %3 : vector<36x1xf32> to vector<36x128xf32>
    %5 = arith.addf %2, %4 : vector<36x128xf32>
    %cst_5 = arith.constant dense<0.000000e+00> : vector<128xf32>
    %6 = vector.multi_reduction <add>, %5, %cst_5 [0] : vector<36x128xf32> to vector<128xf32>
    %7 = vector.shape_cast %6 : vector<128xf32> to vector<1x128xf32>
    %cst_6 = arith.constant 0.027777778 : f32
    %8 = vector.broadcast %cst_6 : f32 to vector<1x128xf32>
    %9 = arith.mulf %7, %8 : vector<1x128xf32>
    %10 = arith.mulf %5, %5 : vector<36x128xf32>
    %cst_7 = arith.constant dense<0.000000e+00> : vector<128xf32>
    %11 = vector.multi_reduction <add>, %10, %cst_7 [0] : vector<36x128xf32> to vector<128xf32>
    %12 = vector.shape_cast %11 : vector<128xf32> to vector<1x128xf32>
    %cst_8 = arith.constant 0.027777778 : f32
    %13 = vector.broadcast %cst_8 : f32 to vector<1x128xf32>
    %14 = arith.mulf %12, %13 : vector<1x128xf32>
    %15 = arith.mulf %9, %9 : vector<1x128xf32>
    %16 = arith.subf %14, %15 : vector<1x128xf32>
    %c0_9 = arith.constant 0 : index
    %c0_10 = arith.constant 0 : index
    %17 = vector.load %arg4[%c0_9, %c0_10] : memref<36x1xf32, #tpu.memory_space<vmem>>, vector<36x1xf32>
    %18 = vector.broadcast %17 : vector<36x1xf32> to vector<36x128xf32>
    %19 = arith.mulf %5, %18 : vector<36x128xf32>
    %cst_11 = arith.constant dense<0.000000e+00> : vector<128xf32>
    %20 = vector.multi_reduction <add>, %19, %cst_11 [0] : vector<36x128xf32> to vector<128xf32>
    %21 = vector.shape_cast %20 : vector<128xf32> to vector<1x128xf32>
    %cst_12 = arith.constant dense<0.000000e+00> : vector<1xf32>
    %22 = vector.multi_reduction <add>, %17, %cst_12 [0] : vector<36x1xf32> to vector<1xf32>
    %23 = vector.shape_cast %22 : vector<1xf32> to vector<1x1xf32>
    %c0_13 = arith.constant 0 : index
    %c0_14 = arith.constant 0 : index
    %24 = vector.load %arg5[%c0_13, %c0_14] : memref<36x1xf32, #tpu.memory_space<vmem>>, vector<36x1xf32>
    %cst_15 = arith.constant dense<0.000000e+00> : vector<1xf32>
    %25 = vector.multi_reduction <add>, %24, %cst_15 [0] : vector<36x1xf32> to vector<1xf32>
    %26 = vector.shape_cast %25 : vector<1xf32> to vector<1x1xf32>
    %cst_16 = arith.constant 9.99999974E-6 : f32
    %27 = vector.broadcast %cst_16 : f32 to vector<1x128xf32>
    %28 = arith.addf %16, %27 : vector<1x128xf32>
    %29 = math.rsqrt %28 : vector<1x128xf32>
    %30 = vector.broadcast %23 : vector<1x1xf32> to vector<1x128xf32>
    %31 = arith.mulf %9, %30 : vector<1x128xf32>
    %32 = arith.subf %21, %31 : vector<1x128xf32>
    %33 = arith.mulf %29, %32 : vector<1x128xf32>
    %34 = vector.broadcast %26 : vector<1x1xf32> to vector<1x128xf32>
    %35 = arith.addf %33, %34 : vector<1x128xf32>
    %c0_17 = arith.constant 0 : index
    %c0_18 = arith.constant 0 : index
    %36 = vector.load %arg6[%c0_17, %c0_18] : memref<1x128xf32, #tpu.memory_space<vmem>>, vector<1x128xf32>
    tpu.vector_store %arg6[%c0_17, %c0_18], %35 {strides = array<i32>} : memref<1x128xf32, #tpu.memory_space<vmem>>, vector<1x128xf32>,
    return
  }
  func.func @transform_0(%arg0: i32) -> (i32, i32) {
    %c0_i32 = arith.constant 0 : i32
    %c0_i32_0 = arith.constant 0 : i32
    return %c0_i32, %arg0 : i32, i32
  }
  func.func @transform_1(%arg0: i32) -> (i32, i32) {
    %c0_i32 = arith.constant 0 : i32
    %c0_i32_0 = arith.constant 0 : i32
    %c0_i32_1 = arith.constant 0 : i32
    return %c0_i32, %c0_i32_0 : i32, i32
  }
  func.func @transform_2(%arg0: i32) -> (i32, i32) {
    %c0_i32 = arith.constant 0 : i32
    %c0_i32_0 = arith.constant 0 : i32
    %c0_i32_1 = arith.constant 0 : i32
    return %c0_i32, %c0_i32_0 : i32, i32
  }
  func.func @transform_3(%arg0: i32) -> (i32, i32) {
    %c0_i32 = arith.constant 0 : i32
    %c0_i32_0 = arith.constant 0 : i32
    %c0_i32_1 = arith.constant 0 : i32
    return %c0_i32, %c0_i32_0 : i32, i32
  }
  func.func @transform_4(%arg0: i32) -> (i32, i32) {
    %c0_i32 = arith.constant 0 : i32
    %c0_i32_0 = arith.constant 0 : i32
    %c0_i32_1 = arith.constant 0 : i32
    return %c0_i32, %c0_i32_0 : i32, i32
  }
  func.func @transform_5(%arg0: i32) -> (i32, i32) {
    %c0_i32 = arith.constant 0 : i32
    %c0_i32_0 = arith.constant 0 : i32
    return %c0_i32, %arg0 : i32, i32
  }
}

</mosaic_0001>

<llo_original>
// kernel: embedding_attention_forward.1
$region0: #{embedding_attention_forward.1}
  #allocation0 [shape = 'u32[]', space=smem, size = 0x4, offset = 0x4, fixed_abs, tag = 'smem constant byte address 0x4 - core index']
  #allocation1 [shape = 'u32[144,128]{1,0:T(1,128)}', space=vmem, size = 0x12000, scoped, tag = 'internal scratch']
  %s0 = inlined_call_operand.vmem [shape: f32[6,128], index: 0, kind: input, shape index: {}]
  %s1 = inlined_call_operand.vmem [shape: f32[36,6], index: 1, kind: input, shape index: {}]
  %s2 = inlined_call_operand.vmem [shape: f32[36,1], index: 2, kind: input, shape index: {}]
  %s3 = inlined_call_operand.vmem [shape: f32[36,1], index: 3, kind: input, shape index: {}]
  %s4 = inlined_call_operand.vmem [shape: f32[36,1], index: 4, kind: input, shape index: {}]
  %s5 = inlined_call_operand.vmem [shape: f32[1,128], index: 5, kind: output, shape index: {}]
  %s6 = sld [smem:[#allocation0]]
  $region30: #{embedding_attention_forward.1} parent=0
    _
  %s8 = ssub.s32 1, %s6
  %s9 = scalar_select 0, %s8, %s6
  // Predicated region
  $region2: #{embedding_attention_forward.1} parent=0 // pred_check
    _
  $region3: #{embedding_attention_forward.1} parent=0 // pred_check_branch
    %11 = sbr.rel (0) target = $region5
  $region4: #{embedding_attention_forward.1} parent=0 // pred_region
    _
  $region5: #{embedding_attention_forward.1} parent=0 // pred_fallthru
    _
  // Predicated region
  $region6: #{embedding_attention_forward.1} parent=0 // pred_check
    _
  $region7: #{embedding_attention_forward.1} parent=0 // pred_check_branch
    %13 = sbr.rel (0) target = $region9
  $region8: #{embedding_attention_forward.1} parent=0 // pred_region
    _
  $region9: #{embedding_attention_forward.1} parent=0 // pred_fallthru
    _
  // Predicated region
  $region10: #{embedding_attention_forward.1} parent=0 // pred_check
    _
  $region11: #{embedding_attention_forward.1} parent=0 // pred_check_branch
    %15 = sbr.rel (0) target = $region13
  $region12: #{embedding_attention_forward.1} parent=0 // pred_region
    _
  $region13: #{embedding_attention_forward.1} parent=0 // pred_fallthru
    _
  // Predicated region
  $region14: #{embedding_attention_forward.1} parent=0 // pred_check
    _
  $region15: #{embedding_attention_forward.1} parent=0 // pred_check_branch
    %17 = sbr.rel (0) target = $region17
  $region16: #{embedding_attention_forward.1} parent=0 // pred_region
    _
  $region17: #{embedding_attention_forward.1} parent=0 // pred_fallthru
    _
  // Predicated region
  $region18: #{embedding_attention_forward.1} parent=0 // pred_check
    _
  $region19: #{embedding_attention_forward.1} parent=0 // pred_check_branch
    %19 = sbr.rel (0) target = $region21
  $region20: #{embedding_attention_forward.1} parent=0 // pred_region
    _
  $region21: #{embedding_attention_forward.1} parent=0 // pred_fallthru
    _
  %v20 = vld [vmem:[%s1] sm:$0xff]
  %v21 = vld [vmem:[%s1 + $0x8] sm:$0xff]
  %v22 = vld [vmem:[%s1 + $0x10] sm:$0xff]
  %v23 = vld [vmem:[%s1 + $0x18] sm:$0xff]
  %v24 = vld [vmem:[%s1 + $0x20] sm:$0xf]
  %v25 = vld [vmem:[%s0] sm:$0x3f]
  %v26 = vld [vmem:[%s2] sm:$0xff]
  %v27 = vld [vmem:[%s2 + $0x8] sm:$0xff]
  %v28 = vld [vmem:[%s2 + $0x10] sm:$0xff]
  %v29 = vld [vmem:[%s2 + $0x18] sm:$0xff]
  %v30 = vld [vmem:[%s2 + $0x20] sm:$0xf]
  %32 = vset.pattern.permute.xlu0 0
  %33 = vperm.xlu0 %32, %v26
  %v34 = vpop.permute.xlu0 %33
  %37 = vset.pattern.permute.xlu0 0
  %38 = vperm.xlu0 %37, %v27
  %v39 = vpop.permute.xlu0 %38
  %42 = vset.pattern.permute.xlu0 0
  %43 = vperm.xlu0 %42, %v28
  %v44 = vpop.permute.xlu0 %43
  %47 = vset.pattern.permute.xlu0 0
  %48 = vperm.xlu0 %47, %v29
  %v49 = vpop.permute.xlu0 %48
  %52 = vset.pattern.permute.xlu0 0
  %53 = vperm.xlu0 %52, %v30
  %v54 = vpop.permute.xlu0 %53
  %vm56 = vcmask 48128
  %v58 = vsel %vm56, %v20, 0
  %v61 = vsel %vm56, %v21, 0
  %v64 = vsel %vm56, %v22, 0
  %v67 = vsel %vm56, %v23, 0
  %v70 = vsel %vm56, %v24, 0
  %vm72 = vcmask 1045504
  %v74 = vsel %vm72, %v25, 0
  %76 = vmatprep.subr.mxu0 0.0
  %77 = vmatpush1.msra.mxu0 %v74
  %78 = vmatprep.subr.mxu0 0.0
  %79 = vmatpush1.msra.mxu0 0.0
  %80 = vmatprep.subr.mxu0 0.0
  %81 = vmatpush1.msra.mxu0 0.0
  %82 = vmatprep.subr.mxu0 0.0
  %83 = vmatpush1.msra.mxu0 0.0
  %84 = vmatprep.subr.mxu0 0.0
  %85 = vmatpush1.msra.mxu0 0.0
  %86 = vmatprep.subr.mxu0 0.0
  %87 = vmatpush1.msra.mxu0 0.0
  %88 = vmatprep.subr.mxu0 0.0
  %89 = vmatpush1.msra.mxu0 0.0
  %90 = vmatprep.subr.mxu0 0.0
  %91 = vmatpush1.msra.mxu0 0.0
  %92 = vmatprep.subr.mxu0 0.0
  %93 = vmatpush1.msra.mxu0 0.0
  %94 = vmatprep.subr.mxu0 0.0
  %95 = vmatpush1.msra.mxu0 0.0
  %96 = vmatprep.subr.mxu0 0.0
  %97 = vmatpush1.msra.mxu0 0.0
  %98 = vmatprep.subr.mxu0 0.0
  %99 = vmatpush1.msra.mxu0 0.0
  %100 = vmatprep.subr.mxu0 0.0
  %101 = vmatpush1.msra.mxu0 0.0
  %102 = vmatprep.subr.mxu0 0.0
  %103 = vmatpush1.msra.mxu0 0.0
  %104 = vmatprep.subr.mxu0 0.0
  %105 = vmatpush1.msra.mxu0 0.0
  %106 = vmatprep.subr.mxu0 0.0
  %107 = vmatpush1.msra.mxu0 0.0
  %108 = vmatprep.subr.mxu0 0.0
  %109 = vmatpush1.msra.mxu0 0.0
  %110 = vmatprep.subr.mxu0 0.0
  %111 = vmatpush1.msra.mxu0 0.0
  %112 = vmatprep.subr.mxu0 0.0
  %113 = vmatpush1.msra.mxu0 0.0
  %114 = vmatprep.subr.mxu0 0.0
  %115 = vmatpush1.msra.mxu0 0.0
  %116 = vmatprep.subr.mxu0 0.0
  %117 = vmatpush1.msra.mxu0 0.0
  %118 = vmatprep.subr.mxu0 0.0
  %119 = vmatpush1.msra.mxu0 0.0
  %120 = vmatprep.subr.mxu0 0.0
  %121 = vmatpush1.msra.mxu0 0.0
  %122 = vmatprep.subr.mxu0 0.0
  %123 = vmatpush1.msra.mxu0 0.0
  %124 = vmatprep.subr.mxu0 0.0
  %125 = vmatpush1.msra.mxu0 0.0
  %126 = vmatprep.subr.mxu0 0.0
  %127 = vmatpush1.msra.mxu0 0.0
  %128 = vmatprep.subr.mxu0 0.0
  %129 = vmatpush1.msra.mxu0 0.0
  %130 = vmatprep.subr.mxu0 0.0
  %131 = vmatpush1.msra.mxu0 0.0
  %132 = vmatprep.subr.mxu0 0.0
  %133 = vmatpush1.msra.mxu0 0.0
  %134 = vmatprep.subr.mxu0 0.0
  %135 = vmatpush1.msra.mxu0 0.0
  %136 = vmatprep.subr.mxu0 0.0
  %137 = vmatpush1.msra.mxu0 0.0
  %138 = vmatprep.subr.mxu0 0.0
  %139 = vmatpush1.msra.mxu0 0.0
  %140 = vmatprep.mubr.f32.mxu0 0.0
  %141 = vmatmul.mubr.f32.gmra.mrb[0].mxu0 %v58
  %v142 = vpop.f32.mrb[0].mxu0
  %v143 = vadd.f32 %v34, %v142
  %v144 = vpop.f32.mrb[0].mxu0
  %145 = vmatprep.mubr.f32.mxu0 0.0
  %146 = vmatmul.mubr.f32.gmra.mrb[0].mxu0 %v61
  %v147 = vpop.f32.mrb[0].mxu0
  %v148 = vadd.f32 %v39, %v147
  %v149 = vpop.f32.mrb[0].mxu0
  %150 = vmatprep.mubr.f32.mxu0 0.0
  %151 = vmatmul.mubr.f32.gmra.mrb[0].mxu0 %v64
  %v152 = vpop.f32.mrb[0].mxu0
  %v153 = vadd.f32 %v44, %v152
  %v154 = vpop.f32.mrb[0].mxu0
  %155 = vmatprep.mubr.f32.mxu0 0.0
  %156 = vmatmul.mubr.f32.gmra.mrb[0].mxu0 %v67
  %v157 = vpop.f32.mrb[0].mxu0
  %v158 = vadd.f32 %v49, %v157
  %v159 = vpop.f32.mrb[0].mxu0
  %160 = vmatprep.mubr.f32.mxu0 0.0
  %161 = vmatmul.mubr.f32.gmra.mrb[0].mxu0 %v70
  %v162 = vpop.f32.mrb[0].mxu0
  %v163 = vadd.f32 %v54, %v162
  %v164 = vpop.f32.mrb[0].mxu0
  %165 = vdwg.mxu0
  %v166 = vadd.f32 %v143, %v148
  %v167 = vadd.f32 %v166, %v153
  %v168 = vadd.f32 %v167, %v158
  %vm169 = vcmask 1043456
  %v170 = vsel %vm169, %v163, 0.0
  %v171 = vadd.f32 %v168, %v170
  %v172 = vrot.slane %v171, 4
  %v173 = vadd.f32 %v171, %v172
  %v174 = vrot.slane %v173, 2
  %v175 = vadd.f32 %v173, %v174
  %v176 = vrot.slane %v175, 1
  %v177 = vadd.f32 %v175, %v176
  %v178 = vmul.f32 %v177, 0.027777778
  %v179 = vmul.f32 %v143, %v143
  %v180 = vmul.f32 %v148, %v148
  %v181 = vmul.f32 %v153, %v153
  %v182 = vmul.f32 %v158, %v158
  %v183 = vmul.f32 %v163, %v163
  %v184 = vadd.f32 %v179, %v180
  %v185 = vadd.f32 %v184, %v181
  %v186 = vadd.f32 %v185, %v182
  %v187 = vsel %vm169, %v183, 0.0
  %v188 = vadd.f32 %v186, %v187
  %v189 = vrot.slane %v188, 4
  %v190 = vadd.f32 %v188, %v189
  %v191 = vrot.slane %v190, 2
  %v192 = vadd.f32 %v190, %v191
  %v193 = vrot.slane %v192, 1
  %v194 = vadd.f32 %v192, %v193
  %v195 = vmul.f32 %v194, 0.027777778
  %v196 = vmul.f32 %v178, %v178
  %v197 = vsub.f32 %v195, %v196
  %v198 = vld [vmem:[%s3] sm:$0xff]
  %v199 = vld [vmem:[%s3 + $0x8] sm:$0xff]
  %v200 = vld [vmem:[%s3 + $0x10] sm:$0xff]
  %v201 = vld [vmem:[%s3 + $0x18] sm:$0xff]
  %v202 = vld [vmem:[%s3 + $0x20] sm:$0xf]
  %204 = vset.pattern.permute.xlu0 0
  %205 = vperm.xlu0 %204, %v198
  %v206 = vpop.permute.xlu0 %205
  %209 = vset.pattern.permute.xlu0 0
  %210 = vperm.xlu0 %209, %v199
  %v211 = vpop.permute.xlu0 %210
  %214 = vset.pattern.permute.xlu0 0
  %215 = vperm.xlu0 %214, %v200
  %v216 = vpop.permute.xlu0 %215
  %219 = vset.pattern.permute.xlu0 0
  %220 = vperm.xlu0 %219, %v201
  %v221 = vpop.permute.xlu0 %220
  %224 = vset.pattern.permute.xlu0 0
  %225 = vperm.xlu0 %224, %v202
  %v226 = vpop.permute.xlu0 %225
  %v228 = vmul.f32 %v143, %v206
  %v229 = vmul.f32 %v148, %v211
  %v230 = vmul.f32 %v153, %v216
  %v231 = vmul.f32 %v158, %v221
  %v232 = vmul.f32 %v163, %v226
  %v233 = vadd.f32 %v228, %v229
  %v234 = vadd.f32 %v233, %v230
  %v235 = vadd.f32 %v234, %v231
  %v236 = vsel %vm169, %v232, 0.0
  %v237 = vadd.f32 %v235, %v236
  %v238 = vrot.slane %v237, 4
  %v239 = vadd.f32 %v237, %v238
  %v240 = vrot.slane %v239, 2
  %v241 = vadd.f32 %v239, %v240
  %v242 = vrot.slane %v241, 1
  %v243 = vadd.f32 %v241, %v242
  %vm244 = vcmask 7168
  %v245 = vsel %vm244, %v198, 0.0
  %v246 = vsel %vm244, %v199, 0.0
  %v247 = vadd.f32 %v245, %v246
  %v248 = vsel %vm244, %v200, 0.0
  %v249 = vadd.f32 %v247, %v248
  %v250 = vsel %vm244, %v201, 0.0
  %v251 = vadd.f32 %v249, %v250
  %vm252 = vcmask 3072
  %v253 = vsel %vm252, %v202, 0.0
  %v254 = vadd.f32 %v251, %v253
  %v255 = vrot.slane %v254, 4
  %v256 = vadd.f32 %v254, %v255
  %v257 = vrot.slane %v256, 2
  %v258 = vadd.f32 %v256, %v257
  %v259 = vrot.slane %v258, 1
  %v260 = vadd.f32 %v258, %v259
  %v261 = vld [vmem:[%s4] sm:$0xff]
  %v262 = vld [vmem:[%s4 + $0x8] sm:$0xff]
  %v263 = vld [vmem:[%s4 + $0x10] sm:$0xff]
  %v264 = vld [vmem:[%s4 + $0x18] sm:$0xff]
  %v265 = vld [vmem:[%s4 + $0x20] sm:$0xf]
  %v266 = vsel %vm244, %v261, 0.0
  %v267 = vsel %vm244, %v262, 0.0
  %v268 = vadd.f32 %v266, %v267
  %v269 = vsel %vm244, %v263, 0.0
  %v270 = vadd.f32 %v268, %v269
  %v271 = vsel %vm244, %v264, 0.0
  %v272 = vadd.f32 %v270, %v271
  %v273 = vsel %vm252, %v265, 0.0
  %v274 = vadd.f32 %v272, %v273
  %v275 = vrot.slane %v274, 4
  %v276 = vadd.f32 %v274, %v275
  %v277 = vrot.slane %v276, 2
  %v278 = vadd.f32 %v276, %v277
  %v279 = vrot.slane %v278, 1
  %v280 = vadd.f32 %v278, %v279
  %v281 = vadd.f32 %v197, 1e-05
  %v282 = vrsqrt.pop %v281
  %284 = vset.pattern.permute.xlu0 0
  %285 = vperm.xlu0 %284, %v260
  %v286 = vpop.permute.xlu0 %285
  %v288 = vmul.f32 %v178, %v286
  %v289 = vsub.f32 %v243, %v288
  %v290 = vmul.f32 %v282, %v289
  %292 = vset.pattern.permute.xlu0 0
  %293 = vperm.xlu0 %292, %v280
  %v294 = vpop.permute.xlu0 %293
  %v296 = vadd.f32 %v290, %v294
  %297 = vst [vmem:[%s5] sm:$0x1] %v296
  // Predicated region
  $region22: #{embedding_attention_forward.1} parent=0 // pred_check
    _
  $region23: #{embedding_attention_forward.1} parent=0 // pred_check_branch
    %299 = sbr.rel (0) target = $region25
  $region24: #{embedding_attention_forward.1} parent=0 // pred_region
    _
  $region25: #{embedding_attention_forward.1} parent=0 // pred_fallthru
    _
  // Predicated region
  $region26: #{embedding_attention_forward.1} parent=0 // pred_check
    _
  $region27: #{embedding_attention_forward.1} parent=0 // pred_check_branch
    %301 = sbr.rel (0) target = $region29
  $region28: #{embedding_attention_forward.1} parent=0 // pred_region
    _
  $region29: #{embedding_attention_forward.1} parent=0 // pred_fallthru
    _

</llo_original>
